<compile_context>
chip_gen: v5e
topology: v5e:2x2
jax: 0.10.0
libtpu: 0.0.40
codegen_flags: <defaults>
</compile_context>

<pallas_src>
import functools

import jax
import jax.numpy as jnp
from jax.experimental import pallas as pl
from jax.experimental.pallas import tpu as pltpu


def _round_up(x: int, m: int) -> int:
    return (x + m - 1) // m * m


def _nbytes(a) -> int:
    return a.size * a.dtype.itemsize


def mlp_kernel(x_ref, w1_ref, b1_ref, w2_ref, b2_ref, w3_ref, b3_ref, o_ref,
               *, tb: int, x_resident: bool):
    # x: either the full resident (b_p, nin) block sliced by grid step, or a
    # streamed (tb, nin) block.
    if x_resident:
        i = pl.program_id(0)
        row0 = pl.multiple_of(i * tb, tb)
        x = x_ref[pl.ds(row0, tb), :]            # (tb, nin) slice of resident x
    else:
        x = x_ref[...]                           # (tb, nin) streamed block

    w1 = w1_ref[...]                             # (nin, NH_pad)

    # Layer 1: Linear(nin, nh) + ReLU.  For nin == 1 this is an outer product:
    # do it on the VPU via broadcast multiply instead of a K=1 MXU matmul.
    if x.shape[1] == 1:
        h1 = (x * w1).astype(jnp.float32)                       # (tb, NH_pad)
    else:
        h1 = jnp.dot(x.astype(w1.dtype), w1,
                     preferred_element_type=jnp.float32)
    h1 = jnp.maximum(h1 + b1_ref[...], 0.0)      # f32 epilogue

    # Layer 2: Linear(nh, nh) + ReLU (MXU, f32 accumulate).
    w2 = w2_ref[...]
    h2 = jnp.dot(h1.astype(w2.dtype), w2, preferred_element_type=jnp.float32)
    h2 = jnp.maximum(h2 + b2_ref[...], 0.0)

    # Layer 3: Linear(nh, nout) (MXU, f32 accumulate) + bias.
    w3 = w3_ref[...]
    out = jnp.dot(h2.astype(w3.dtype), w3, preferred_element_type=jnp.float32)
    out = out + b3_ref[...]

    o_ref[...] = out.astype(o_ref.dtype)         # lane-dense (tb, NOUT_pad) store


def init_params(key, nin, nh, nout):
    """Deterministic init mimicking nn.Linear's uniform(-1/sqrt(fan_in), +).

    Weights are stored as (in_features, out_features) = transpose of PyTorch's
    nn.Linear layout, so the kernel computes y = x @ W + b directly.
    """
    keys = jax.random.split(key, 6)

    def linear(kw, kb, fan_in, fan_out):
        bound = 1.0 / jnp.sqrt(jnp.float32(fan_in))
        w = jax.random.uniform(kw, (fan_in, fan_out), jnp.float32, -bound, bound)
        b = jax.random.uniform(kb, (1, fan_out), jnp.float32, -bound, bound)
        return w, b

    w1, b1 = linear(keys[0], keys[1], nin, nh)
    w2, b2 = linear(keys[2], keys[3], nh, nh)
    w3, b3 = linear(keys[4], keys[5], nh, nout)
    return {"w1": w1, "b1": b1, "w2": w2, "b2": b2, "w3": w3, "b3": b3}


def prepare_params(params, *, compute_dtype=jnp.float32):
    """One-time padding (+ optional weight cast) done OUTSIDE the per-call path.

    nh/nout are padded up to multiples of 128 (lane-dense); padded rows/cols
    are zero so the math is unchanged through ReLU.  Weights may be cast to
    bf16 for the MXU (halves resident VMEM / DMA); biases stay f32 since the
    bias-add/ReLU epilogue runs in f32.
    """
    w1, b1 = params["w1"], params["b1"]
    w2, b2 = params["w2"], params["b2"]
    w3, b3 = params["w3"], params["b3"]

    nin, nh = w1.shape
    nout = w3.shape[1]
    nh_p = _round_up(nh, 128)
    nout_p = _round_up(nout, 128)

    cd = compute_dtype
    return {
        "w1": jnp.pad(w1, ((0, 0), (0, nh_p - nh))).astype(cd),
        "b1": jnp.pad(b1, ((0, 0), (0, nh_p - nh))).astype(jnp.float32),
        "w2": jnp.pad(w2, ((0, nh_p - nh), (0, nh_p - nh))).astype(cd),
        "b2": jnp.pad(b2, ((0, 0), (0, nh_p - nh))).astype(jnp.float32),
        "w3": jnp.pad(w3, ((0, nh_p - nh), (0, nout_p - nout))).astype(cd),
        "b3": jnp.pad(b3, ((0, 0), (0, nout_p - nout))).astype(jnp.float32),
        "dims": {"nin": nin, "nh": nh, "nout": nout,
                 "nh_p": nh_p, "nout_p": nout_p},
    }


def net_forward(x, prepped, *, tb=None):
    """Forward pass of Net in one pipelined Pallas call.

    x: (B, nin) float32.  `prepped` comes from prepare_params() (padded once).
    """
    dims = prepped["dims"]
    nin, nh, nout = dims["nin"], dims["nh"], dims["nout"]
    nh_p, nout_p = dims["nh_p"], dims["nout_p"]

    B = x.shape[0]
    assert x.shape[1] == nin

    # Batch tile: 8-sublane aligned, cap 512 (review: 256 left HBM roofline on
    # the table; streamed blocks are tiny so VMEM cost is negligible).
    if tb is None:
        tb = min(512, _round_up(B, 8))
    # Even grid-step count when B spans multiple tiles so v7x megacore
    # ("parallel" axis) shards evenly across both TensorCores.
    if B > tb:
        b_p = _round_up(B, 2 * tb)
    else:
        b_p = _round_up(B, tb)
    grid_steps = b_p // tb

    x_p = jnp.pad(x, ((0, b_p - B), (0, 0)))     # only x is padded per call

    w1_p, b1_p = prepped["w1"], prepped["b1"]
    w2_p, b2_p = prepped["w2"], prepped["b2"]
    w3_p, b3_p = prepped["w3"], prepped["b3"]

    # Small x: keep it fully resident in VMEM (single-buffered) and slice it
    # in-kernel -> no lane-sparse (tb, nin) DMA per grid step.
    x_resident = _nbytes(x_p) <= (4 << 20)

    # Resident weights/biases: constant block index across the batch axis ->
    # DMA'd once; single-buffered since they never re-DMA.
    def resident(a):
        return pl.BlockSpec(a.shape, lambda i: (0, 0),
                            pipeline_mode=pl.Buffered(1))

    if x_resident:
        x_spec = pl.BlockSpec((b_p, nin), lambda i: (0, 0),
                              pipeline_mode=pl.Buffered(1))
    else:
        x_spec = pl.BlockSpec((tb, nin), lambda i: (i, 0))

    # Explicit VMEM budget (never below the 32 MiB default; capped for v7x).
    resident_bytes = sum(_nbytes(a) for a in
                         (w1_p, b1_p, w2_p, b2_p, w3_p, b3_p))
    resident_bytes += _nbytes(x_p) if x_resident else 0
    stream_bytes = 2 * tb * nout_p * 4 + (0 if x_resident else 2 * tb * nin * 4)
    scratch_bytes = 4 * tb * nh_p * 4            # h1/h2 intermediates + slack
    vmem_limit = min(max(2 * (resident_bytes + stream_bytes + scratch_bytes),
                         32 << 20), 96 << 20)

    cost = pl.CostEstimate(
        flops=int(2 * B * (nin * nh + nh * nh + nh * nout)),
        transcendentals=0,
        bytes_accessed=int(_nbytes(x) + resident_bytes + B * nout_p * 4),
    )

    kernel = functools.partial(mlp_kernel, tb=tb, x_resident=x_resident)

    out_p = pl.pallas_call(
        kernel,
        out_shape=jax.ShapeDtypeStruct((b_p, nout_p), jnp.float32),
        grid=(grid_steps,),
        in_specs=[
            x_spec,
            resident(w1_p), resident(b1_p),
            resident(w2_p), resident(b2_p),
            resident(w3_p), resident(b3_p),
        ],
        out_specs=pl.BlockSpec((tb, nout_p), lambda i: (i, 0)),
        compiler_params=pltpu.CompilerParams(
            dimension_semantics=("parallel",),
            vmem_limit_bytes=vmem_limit),
        cost_estimate=cost,
    )(x_p, w1_p, b1_p, w2_p, b2_p, w3_p, b3_p)

    # Padded batch rows (>= B) hold ReLU(bias)-derived garbage by design; they
    # are sliced off here and must not be aliased/reused.
    return out_p[:B, :nout]


def net_forward_ref(x, p):
    h = jnp.maximum(x @ p["w1"] + p["b1"], 0.0)
    h = jnp.maximum(h @ p["w2"] + p["b2"], 0.0)
    return h @ p["w3"] + p["b3"]


if __name__ == "__main__":
    # Shapes consistent with the spec: x = torch.randn((5, 1)) -> nin=1.
    B, nin, nh, nout = 5, 1, 32, 1

    key = jax.random.PRNGKey(0)
    kx, kp = jax.random.split(key)
    x = jax.random.normal(kx, (B, nin), jnp.float32)
    params = init_params(kp, nin, nh, nout)

    # Pad/layout weights once, outside the per-call path (perf review item 1).
    # For large nh on v6e/v7x, pass compute_dtype=jnp.bfloat16 here (and loosen
    # the tolerance below); accumulation/bias/ReLU stay f32 in the kernel.
    prepped = prepare_params(params, compute_dtype=jnp.float32)

    out = net_forward(x, prepped)
    out = jax.block_until_ready(out)

    ref = net_forward_ref(x, params)
    assert out.shape == (B, nout)
    assert jnp.allclose(out, ref, atol=1e-5, rtol=1e-5), (
        f"max abs err {jnp.max(jnp.abs(out - ref))}")

    print("KERNEL_OK")
</pallas_src>

<mosaic_0001>
module attributes {stable_mosaic.version = 11 : i64} {
  func.func @mlp_kernel(%arg0: i32, %arg1: memref<8x1xf32, #tpu.memory_space<vmem>>, %arg2: memref<1x128xf32, #tpu.memory_space<vmem>>, %arg3: memref<1x128xf32, #tpu.memory_space<vmem>>, %arg4: memref<128x128xf32, #tpu.memory_space<vmem>>, %arg5: memref<1x128xf32, #tpu.memory_space<vmem>>, %arg6: memref<128x128xf32, #tpu.memory_space<vmem>>, %arg7: memref<1x128xf32, #tpu.memory_space<vmem>>, %arg8: memref<8x128xf32, #tpu.memory_space<vmem>>) attributes {dimension_semantics = [#tpu.dimension_semantics<parallel>], iteration_bounds = array<i64: 1>, scalar_prefetch = 0 : i64, scratch_operands = 0 : i64, tpu.core_type = #tpu.core_type<tc>, window_params = [{pipeline_mode = #tpu.pipeline_mode<synchronous>, transform_indices = @transform_0, window_bounds = array<i64: 8, 1>}, {pipeline_mode = #tpu.pipeline_mode<synchronous>, transform_indices = @transform_1, window_bounds = array<i64: 1, 128>}, {pipeline_mode = #tpu.pipeline_mode<synchronous>, transform_indices = @transform_2, window_bounds = array<i64: 1, 128>}, {pipeline_mode = #tpu.pipeline_mode<synchronous>, transform_indices = @transform_3, window_bounds = array<i64: 128, 128>}, {pipeline_mode = #tpu.pipeline_mode<synchronous>, transform_indices = @transform_4, window_bounds = array<i64: 1, 128>}, {pipeline_mode = #tpu.pipeline_mode<synchronous>, transform_indices = @transform_5, window_bounds = array<i64: 128, 128>}, {pipeline_mode = #tpu.pipeline_mode<synchronous>, transform_indices = @transform_6, window_bounds = array<i64: 1, 128>}, {transform_indices = @transform_7, window_bounds = array<i64: 8, 128>}]} {
    %c8_i32 = arith.constant 8 : i32
    %0 = arith.muli %arg0, %c8_i32 : i32
    %1 = tpu.assume_multiple %0, 8 : i32
    %2 = arith.index_cast %1 : i32 to index
    %c0 = arith.constant 0 : index
    %3 = vector.load %arg1[%2, %c0] : memref<8x1xf32, #tpu.memory_space<vmem>>, vector<8x1xf32>
    %c0_0 = arith.constant 0 : index
    %c0_1 = arith.constant 0 : index
    %4 = vector.load %arg2[%c0_0, %c0_1] : memref<1x128xf32, #tpu.memory_space<vmem>>, vector<1x128xf32>
    %5 = vector.broadcast %3 : vector<8x1xf32> to vector<8x128xf32>
    %6 = vector.broadcast %4 : vector<1x128xf32> to vector<8x128xf32>
    %7 = arith.mulf %5, %6 : vector<8x128xf32>
    %c0_2 = arith.constant 0 : index
    %c0_3 = arith.constant 0 : index
    %8 = vector.load %arg3[%c0_2, %c0_3] : memref<1x128xf32, #tpu.memory_space<vmem>>, vector<1x128xf32>
    %9 = vector.broadcast %8 : vector<1x128xf32> to vector<8x128xf32>
    %10 = arith.addf %7, %9 : vector<8x128xf32>
    %cst = arith.constant 0.000000e+00 : f32
    %11 = vector.broadcast %cst : f32 to vector<8x128xf32>
    %12 = arith.maximumf %10, %11 : vector<8x128xf32>
    %c0_4 = arith.constant 0 : index
    %c0_5 = arith.constant 0 : index
    %13 = vector.load %arg4[%c0_4, %c0_5] : memref<128x128xf32, #tpu.memory_space<vmem>>, vector<128x128xf32>
    %cst_6 = arith.constant dense<0.000000e+00> : vector<8x128xf32>
    %14 = tpu.matmul %12, %13, %cst_6 {dimension_numbers = #tpu.dot_dimension_numbers<[1], [0], [0], [1], [0, 0, 1, 1], [], []>} : vector<8x128xf32>, vector<128x128xf32>, vector<8x128xf32> -> vector<8x128xf32>
    %c0_7 = arith.constant 0 : index
    %c0_8 = arith.constant 0 : index
    %15 = vector.load %arg5[%c0_7, %c0_8] : memref<1x128xf32, #tpu.memory_space<vmem>>, vector<1x128xf32>
    %16 = vector.broadcast %15 : vector<1x128xf32> to vector<8x128xf32>
    %17 = arith.addf %14, %16 : vector<8x128xf32>
    %cst_9 = arith.constant 0.000000e+00 : f32
    %18 = vector.broadcast %cst_9 : f32 to vector<8x128xf32>
    %19 = arith.maximumf %17, %18 : vector<8x128xf32>
    %c0_10 = arith.constant 0 : index
    %c0_11 = arith.constant 0 : index
    %20 = vector.load %arg6[%c0_10, %c0_11] : memref<128x128xf32, #tpu.memory_space<vmem>>, vector<128x128xf32>
    %cst_12 = arith.constant dense<0.000000e+00> : vector<8x128xf32>
    %21 = tpu.matmul %19, %20, %cst_12 {dimension_numbers = #tpu.dot_dimension_numbers<[1], [0], [0], [1], [0, 0, 1, 1], [], []>} : vector<8x128xf32>, vector<128x128xf32>, vector<8x128xf32> -> vector<8x128xf32>
    %c0_13 = arith.constant 0 : index
    %c0_14 = arith.constant 0 : index
    %22 = vector.load %arg7[%c0_13, %c0_14] : memref<1x128xf32, #tpu.memory_space<vmem>>, vector<1x128xf32>
    %23 = vector.broadcast %22 : vector<1x128xf32> to vector<8x128xf32>
    %24 = arith.addf %21, %23 : vector<8x128xf32>
    %c0_15 = arith.constant 0 : index
    %c0_16 = arith.constant 0 : index
    %25 = vector.load %arg8[%c0_15, %c0_16] : memref<8x128xf32, #tpu.memory_space<vmem>>, vector<8x128xf32>
    tpu.vector_store %arg8[%c0_15, %c0_16], %24 {strides = array<i32>} : memref<8x128xf32, #tpu.memory_space<vmem>>, vector<8x128xf32>,
    return
  }
  func.func @transform_0(%arg0: i32) -> (i32, i32) {
    %c0_i32 = arith.constant 0 : i32
    %c0_i32_0 = arith.constant 0 : i32
    %c0_i32_1 = arith.constant 0 : i32
    return %c0_i32, %c0_i32_0 : i32, i32
  }
  func.func @transform_1(%arg0: i32) -> (i32, i32) {
    %c0_i32 = arith.constant 0 : i32
    %c0_i32_0 = arith.constant 0 : i32
    %c0_i32_1 = arith.constant 0 : i32
    return %c0_i32, %c0_i32_0 : i32, i32
  }
  func.func @transform_2(%arg0: i32) -> (i32, i32) {
    %c0_i32 = arith.constant 0 : i32
    %c0_i32_0 = arith.constant 0 : i32
    %c0_i32_1 = arith.constant 0 : i32
    return %c0_i32, %c0_i32_0 : i32, i32
  }
  func.func @transform_3(%arg0: i32) -> (i32, i32) {
    %c0_i32 = arith.constant 0 : i32
    %c0_i32_0 = arith.constant 0 : i32
    %c0_i32_1 = arith.constant 0 : i32
    return %c0_i32, %c0_i32_0 : i32, i32
  }
  func.func @transform_4(%arg0: i32) -> (i32, i32) {
    %c0_i32 = arith.constant 0 : i32
    %c0_i32_0 = arith.constant 0 : i32
    %c0_i32_1 = arith.constant 0 : i32
    return %c0_i32, %c0_i32_0 : i32, i32
  }
  func.func @transform_5(%arg0: i32) -> (i32, i32) {
    %c0_i32 = arith.constant 0 : i32
    %c0_i32_0 = arith.constant 0 : i32
    %c0_i32_1 = arith.constant 0 : i32
    return %c0_i32, %c0_i32_0 : i32, i32
  }
  func.func @transform_6(%arg0: i32) -> (i32, i32) {
    %c0_i32 = arith.constant 0 : i32
    %c0_i32_0 = arith.constant 0 : i32
    %c0_i32_1 = arith.constant 0 : i32
    return %c0_i32, %c0_i32_0 : i32, i32
  }
  func.func @transform_7(%arg0: i32) -> (i32, i32) {
    %c0_i32 = arith.constant 0 : i32
    %c0_i32_0 = arith.constant 0 : i32
    return %arg0, %c0_i32 : i32, i32
  }
}

</mosaic_0001>

<llo_original>
// kernel: tpu_custom_call.1
$region0: #{tpu_custom_call.1}
  #allocation0 [shape = 'u32[]', space=smem, size = 0x4, offset = 0x4, fixed_abs, tag = 'smem constant byte address 0x4 - core index']
  #allocation1 [shape = 'u32[72,128]{1,0:T(1,128)}', space=vmem, size = 0x9000, scoped, tag = 'internal scratch']
  %s0 = inlined_call_operand.vmem [shape: f32[8,1], index: 0, kind: input, shape index: {}]
  %s1 = inlined_call_operand.vmem [shape: f32[1,128], index: 1, kind: input, shape index: {}]
  %s2 = inlined_call_operand.vmem [shape: f32[1,128], index: 2, kind: input, shape index: {}]
  %s3 = inlined_call_operand.hbm [shape: f32[128,128], index: 3, kind: input, shape index: {}]
  %s4 = inlined_call_operand.vmem [shape: f32[1,128], index: 4, kind: input, shape index: {}]
  %s5 = inlined_call_operand.hbm [shape: f32[128,128], index: 5, kind: input, shape index: {}]
  %s6 = inlined_call_operand.vmem [shape: f32[1,128], index: 6, kind: input, shape index: {}]
  %s7 = inlined_call_operand.hbm [shape: f32[8,128], index: 7, kind: output, shape index: {}]
  %s8 = sld [smem:[#allocation0]]
  $region46: #{tpu_custom_call.1} parent=0
    _
  %s10 = ssub.s32 1, %s8
  %s11 = scalar_select 0, %s10, %s8
  $region1: #{tpu_custom_call.1} parent=0
    #allocation2 [shape = 'u8[65536]{0}', space=vmem, size = 0x10000, scoped, tag = 'input window, operand 3, single buffered']
    #allocation3 [shape = 's32[1]{0}', space=sflag, size = 0x4, scoped, tag = 'scoped memory for tpu_custom_call.1']
    #allocation4 [shape = 's32[1]{0}', space=sflag, size = 0x4, scoped, tag = 'scoped memory for tpu_custom_call.1']
    #allocation5 [shape = 'u8[65536]{0}', space=vmem, size = 0x10000, scoped, tag = 'input window, operand 5, single buffered']
    #allocation6 [shape = 's32[1]{0}', space=sflag, size = 0x4, scoped, tag = 'scoped memory for tpu_custom_call.1']
    #allocation7 [shape = 'u8[4096]{0}', space=vmem, size = 0x1000, scoped, tag = 'output window, operand 0, single buffered']
    %12 = vsyncpa [#allocation3], 0
    %13 = vsyncpa [#allocation6], 0
    %14 = vsyncpa [#allocation4], 0
    // Predicated region
    $region2: #{tpu_custom_call.1} parent=1 // pred_check
      _
    $region3: #{tpu_custom_call.1} parent=1 // pred_check_branch
      %16 = sbr.rel (0) target = $region5
    $region4: #{tpu_custom_call.1} parent=1 // pred_region
      _
    $region5: #{tpu_custom_call.1} parent=1 // pred_fallthru
      _
    // Predicated region
    $region6: #{tpu_custom_call.1} parent=1 // pred_check
      _
    $region7: #{tpu_custom_call.1} parent=1 // pred_check_branch
      %18 = sbr.rel (0) target = $region9
    $region8: #{tpu_custom_call.1} parent=1 // pred_region
      _
    $region9: #{tpu_custom_call.1} parent=1 // pred_fallthru
      _
    // Predicated region
    $region10: #{tpu_custom_call.1} parent=1 // pred_check
      _
    $region11: #{tpu_custom_call.1} parent=1 // pred_check_branch
      %20 = sbr.rel (0) target = $region13
    $region12: #{tpu_custom_call.1} parent=1 // pred_region
      _
    $region13: #{tpu_custom_call.1} parent=1 // pred_fallthru
      _
    // Predicated region
    $region14: #{tpu_custom_call.1} parent=1 // pred_check
      _
    $region15: #{tpu_custom_call.1} parent=1 // pred_check_branch
      %22 = sbr.rel (0) target = $region17
    $region16: #{tpu_custom_call.1} parent=1 // pred_region
      %24 = vsyncadd [#allocation3], 0
      %s25 = sshll.u32 %s3, 4
      %s26 = int_to_ptr.hbm [resolvable:$true] %s25
      %s27 = sshll.u32 [#allocation2], 4
      %s28 = int_to_ptr.vmem [resolvable:$true] %s27
      %33 = dma.hbm_to_vmem [thread:$0]  %s26, 2048, %s28, [#allocation3], 128, 128, 8
    $region17: #{tpu_custom_call.1} parent=1 // pred_fallthru
      _
    // Predicated region
    $region18: #{tpu_custom_call.1} parent=1 // pred_check
      _
    $region19: #{tpu_custom_call.1} parent=1 // pred_check_branch
      %35 = sbr.rel (0) target = $region21
    $region20: #{tpu_custom_call.1} parent=1 // pred_region
      _
    $region21: #{tpu_custom_call.1} parent=1 // pred_fallthru
      _
    // Predicated region
    $region22: #{tpu_custom_call.1} parent=1 // pred_check
      _
    $region23: #{tpu_custom_call.1} parent=1 // pred_check_branch
      %37 = sbr.rel (0) target = $region25
    $region24: #{tpu_custom_call.1} parent=1 // pred_region
      %39 = vsyncadd [#allocation6], 0
      %s40 = sshll.u32 %s5, 4
      %s41 = int_to_ptr.hbm [resolvable:$true] %s40
      %s42 = sshll.u32 [#allocation5], 4
      %s43 = int_to_ptr.vmem [resolvable:$true] %s42
      %48 = dma.hbm_to_vmem [thread:$0]  %s41, 2048, %s43, [#allocation6], 128, 128, 8
    $region25: #{tpu_custom_call.1} parent=1 // pred_fallthru
      _
    // Predicated region
    $region26: #{tpu_custom_call.1} parent=1 // pred_check
      _
    $region27: #{tpu_custom_call.1} parent=1 // pred_check_branch
      %50 = sbr.rel (0) target = $region29
    $region28: #{tpu_custom_call.1} parent=1 // pred_region
      _
    $region29: #{tpu_custom_call.1} parent=1 // pred_fallthru
      _
    // Predicated region
    $region30: #{tpu_custom_call.1} parent=1 // pred_check
      _
    $region31: #{tpu_custom_call.1} parent=1 // pred_check_branch
      %52 = sbr.rel (0) target = $region33
    $region32: #{tpu_custom_call.1} parent=1 // pred_region
      %54 = dma.done [#allocation3], 2048
    $region33: #{tpu_custom_call.1} parent=1 // pred_fallthru
      _
    // Predicated region
    $region34: #{tpu_custom_call.1} parent=1 // pred_check
      _
    $region35: #{tpu_custom_call.1} parent=1 // pred_check_branch
      %56 = sbr.rel (0) target = $region37
    $region36: #{tpu_custom_call.1} parent=1 // pred_region
      %58 = dma.done [#allocation6], 2048
    $region37: #{tpu_custom_call.1} parent=1 // pred_fallthru
      _
    %s59 = smul.u32 0, 8
    %s60 = scalar_lea.vmem %s0, %s59
    %v61 = vld [vmem:[%s60] sm:$0xff]
    %v62 = vld [vmem:[%s1] sm:$0x1]
    %64 = vset.pattern.permute.xlu0 0
    %65 = vperm.xlu0 %64, %v61
    %v66 = vpop.permute.xlu0 %65
    %v69 = vperm.slane %v62, 0
    %v71 = vmul.f32 %v66, %v69
    %v72 = vld [vmem:[%s2] sm:$0x1]
    %v74 = vperm.slane %v72, 0
    %v76 = vadd.f32 %v71, %v74
    %v77 = vmax.f32 %v76, 0.0
    %v78 = vld [vmem:[#allocation2] sm:$0xff]
    %v79 = vld [vmem:[#allocation2 + $0x8] sm:$0xff]
    %v80 = vld [vmem:[#allocation2 + $0x10] sm:$0xff]
    %v81 = vld [vmem:[#allocation2 + $0x18] sm:$0xff]
    %v82 = vld [vmem:[#allocation2 + $0x20] sm:$0xff]
    %v83 = vld [vmem:[#allocation2 + $0x28] sm:$0xff]
    %v84 = vld [vmem:[#allocation2 + $0x30] sm:$0xff]
    %v85 = vld [vmem:[#allocation2 + $0x38] sm:$0xff]
    %v86 = vld [vmem:[#allocation2 + $0x40] sm:$0xff]
    %v87 = vld [vmem:[#allocation2 + $0x48] sm:$0xff]
    %v88 = vld [vmem:[#allocation2 + $0x50] sm:$0xff]
    %v89 = vld [vmem:[#allocation2 + $0x58] sm:$0xff]
    %v90 = vld [vmem:[#allocation2 + $0x60] sm:$0xff]
    %v91 = vld [vmem:[#allocation2 + $0x68] sm:$0xff]
    %v92 = vld [vmem:[#allocation2 + $0x70] sm:$0xff]
    %v93 = vld [vmem:[#allocation2 + $0x78] sm:$0xff]
    %v94 = vld [vmem:[%s4] sm:$0x1]
    %v96 = vperm.slane %v94, 0
    %98 = vmatpush.msra.mxu0 %v93
    %99 = vmatpush.msra.mxu0 %v92
    %100 = vmatpush.msra.mxu0 %v91
    %101 = vmatpush.msra.mxu0 %v90
    %102 = vmatpush.msra.mxu0 %v89
    %103 = vmatpush.msra.mxu0 %v88
    %104 = vmatpush.msra.mxu0 %v87
    %105 = vmatpush.msra.mxu0 %v86
    %106 = vmatpush.msra.mxu0 %v85
    %107 = vmatpush.msra.mxu0 %v84
    %108 = vmatpush.msra.mxu0 %v83
    %109 = vmatpush.msra.mxu0 %v82
    %110 = vmatpush.msra.mxu0 %v81
    %111 = vmatpush.msra.mxu0 %v80
    %112 = vmatpush.msra.mxu0 %v79
    %113 = vmatpush.msra.mxu0 %v78
    %114 = vmatmul.f32.gmra.mxu0 %v77
    %v115 = vpop.f32.mrf.mxu0
    %v116 = vadd.f32 %v96, %v115
    %117 = vdwg.mxu0
    %v118 = vmax.f32 %v116, 0.0
    %v119 = vld [vmem:[#allocation5] sm:$0xff]
    %v120 = vld [vmem:[#allocation5 + $0x8] sm:$0xff]
    %v121 = vld [vmem:[#allocation5 + $0x10] sm:$0xff]
    %v122 = vld [vmem:[#allocation5 + $0x18] sm:$0xff]
    %v123 = vld [vmem:[#allocation5 + $0x20] sm:$0xff]
    %v124 = vld [vmem:[#allocation5 + $0x28] sm:$0xff]
    %v125 = vld [vmem:[#allocation5 + $0x30] sm:$0xff]
    %v126 = vld [vmem:[#allocation5 + $0x38] sm:$0xff]
    %v127 = vld [vmem:[#allocation5 + $0x40] sm:$0xff]
    %v128 = vld [vmem:[#allocation5 + $0x48] sm:$0xff]
    %v129 = vld [vmem:[#allocation5 + $0x50] sm:$0xff]
    %v130 = vld [vmem:[#allocation5 + $0x58] sm:$0xff]
    %v131 = vld [vmem:[#allocation5 + $0x60] sm:$0xff]
    %v132 = vld [vmem:[#allocation5 + $0x68] sm:$0xff]
    %v133 = vld [vmem:[#allocation5 + $0x70] sm:$0xff]
    %v134 = vld [vmem:[#allocation5 + $0x78] sm:$0xff]
    %v135 = vld [vmem:[%s6] sm:$0x1]
    %v137 = vperm.slane %v135, 0
    %139 = vmatpush.msra.mxu0 %v134
    %140 = vmatpush.msra.mxu0 %v133
    %141 = vmatpush.msra.mxu0 %v132
    %142 = vmatpush.msra.mxu0 %v131
    %143 = vmatpush.msra.mxu0 %v130
    %144 = vmatpush.msra.mxu0 %v129
    %145 = vmatpush.msra.mxu0 %v128
    %146 = vmatpush.msra.mxu0 %v127
    %147 = vmatpush.msra.mxu0 %v126
    %148 = vmatpush.msra.mxu0 %v125
    %149 = vmatpush.msra.mxu0 %v124
    %150 = vmatpush.msra.mxu0 %v123
    %151 = vmatpush.msra.mxu0 %v122
    %152 = vmatpush.msra.mxu0 %v121
    %153 = vmatpush.msra.mxu0 %v120
    %154 = vmatpush.msra.mxu0 %v119
    %155 = vmatmul.f32.gmra.mxu0 %v118
    %v156 = vpop.f32.mrf.mxu0
    %v157 = vadd.f32 %v137, %v156
    %158 = vdwg.mxu0
    %159 = vst [vmem:[#allocation7] sm:$0xff] %v157
    // Predicated region
    $region38: #{tpu_custom_call.1} parent=1 // pred_check
      _
    $region39: #{tpu_custom_call.1} parent=1 // pred_check_branch
      %161 = sbr.rel (0) target = $region41
    $region40: #{tpu_custom_call.1} parent=1 // pred_region
      %163 = vsyncadd [#allocation4], 0
      %s165 = sshll.u32 [#allocation7], 4
      %s166 = int_to_ptr.vmem [resolvable:$true] %s165
      %s167 = sshll.u32 %s7, 4
      %s168 = int_to_ptr.hbm [resolvable:$true] %s167
      %170 = dma.vmem_to_hbm [thread:$0]  %s166, 128, %s168, [#allocation4]
    $region41: #{tpu_custom_call.1} parent=1 // pred_fallthru
      _
    // Predicated region
    $region42: #{tpu_custom_call.1} parent=1 // pred_check
      _
    $region43: #{tpu_custom_call.1} parent=1 // pred_check_branch
      %172 = sbr.rel (0) target = $region45
    $region44: #{tpu_custom_call.1} parent=1 // pred_region
      %174 = dma.done [#allocation4], 128
    $region45: #{tpu_custom_call.1} parent=1 // pred_fallthru
      _
    %175 = vsyncpa [#allocation3], 1
    %176 = vsyncpa [#allocation6], 1
    %177 = vsyncpa [#allocation4], 1

</llo_original>
